<compile_context>
chip_gen: v5e
topology: v5e:2x2
jax: 0.10.0
libtpu: 0.0.40
codegen_flags: <defaults>
</compile_context>

<pallas_src>
import functools

import jax
import jax.numpy as jnp
from jax import lax
from jax.experimental import pallas as pl
from jax.experimental.pallas import tpu as pltpu

_EPS = 1e-8           # matches torch.nn.functional.cosine_similarity default eps
_EPS2 = _EPS * _EPS   # clamp applied to the product of *squared* norms


def _contrastive_loss_kernel(x1_ref, x2_ref, t_ref, o_ref, *,
                             margin, n_valid, tile_rows):
    x1 = x1_ref[...].astype(jnp.float32)          # (TB, D)
    x2 = x2_ref[...].astype(jnp.float32)          # (TB, D)
    t = t_ref[...].astype(jnp.float32)            # (TB, 1)

    # Row-wise cosine similarity along the lane (feature) axis.
    dot = jnp.sum(x1 * x2, axis=-1, keepdims=True)   # (TB, 1)
    s1 = jnp.sum(x1 * x1, axis=-1, keepdims=True)    # (TB, 1)
    s2 = jnp.sum(x2 * x2, axis=-1, keepdims=True)    # (TB, 1)
    # torch: cos = dot * rsqrt(clamp(|x1|^2 * |x2|^2, eps^2))
    cos = dot * lax.rsqrt(jnp.maximum(s1 * s2, _EPS2))

    hinge = jnp.maximum(margin - cos, 0.0)
    per_row = (1.0 - t) * cos * cos + t * hinge * hinge   # (TB, 1)

    # Defensive select for the partial last block: rows past n_valid were read
    # out-of-bounds (garbage, possibly NaN/Inf).  Pallas discards their writes
    # anyway (out_shape is exactly (B,1)), but keep the *select* (never a
    # multiplicative mask) so nothing non-finite leaves the kernel.
    row = (pl.program_id(0) * tile_rows
           + lax.broadcasted_iota(jnp.int32, per_row.shape, 0))
    o_ref[...] = jnp.where(row < n_valid, per_row, 0.0)


def _round_up(x, m):
    return ((x + m - 1) // m) * m


def contrastive_loss(output1, output2, target, margin=1.0, tile_rows=None):
    """output1, output2: (B, D); target: (B,). Returns scalar float32 loss.

    Eps handling matches current torch (clamp on the product of norms); it
    differs from per-norm clamping only when exactly one row has ~zero norm.
    """
    B, D = output1.shape
    itemsize = jnp.dtype(output1.dtype).itemsize
    row_pack = max(8, 32 // itemsize)       # f32: 8, bf16: 16, int8/fp8: 32

    # ---- per-generation VMEM budget (v7x has 64 MiB physical vs 128 MiB on
    # v5e/v6e); keep 2 inputs x 2 pipeline buffers comfortably inside it.
    try:
        vmem_bytes = int(getattr(pltpu.get_tpu_info(), "vmem_capacity_bytes",
                                 64 * 1024 * 1024))
    except Exception:
        vmem_bytes = 64 * 1024 * 1024       # conservative fallback (v7x)
    per_input_budget = max(2 << 20, min(8 << 20, vmem_bytes // 16))

    # ---- tile rows: as many full rows as fit the budget (no padding copies).
    row_bytes = max(1, D * itemsize)
    if tile_rows is None:
        tb = per_input_budget // row_bytes
        tb = max(row_pack, (tb // row_pack) * row_pack)
    else:
        tb = max(row_pack, _round_up(int(tile_rows), row_pack))
    tb = min(tb, _round_up(B, row_pack))    # don't over-tile tiny batches
    grid_n = pl.cdiv(B, tb)

    tile_bytes = tb * row_bytes
    vmem_limit = int(min(max(4 * tile_bytes + (8 << 20), 32 << 20),
                         int(vmem_bytes * 0.9)))

    target2d = target.reshape(B, 1).astype(jnp.float32)
    kernel = functools.partial(
        _contrastive_loss_kernel,
        margin=float(margin), n_valid=B, tile_rows=tb)

    per_row = pl.pallas_call(
        kernel,
        out_shape=jax.ShapeDtypeStruct((B, 1), jnp.float32),
        grid=(grid_n,),
        in_specs=[
            # Last block dim == full D -> exempt from 128-lane divisibility;
            # lane padding happens only in the VMEM layout, never via HBM copy.
            pl.BlockSpec((tb, D), lambda i: (i, 0)),
            pl.BlockSpec((tb, D), lambda i: (i, 0)),
            pl.BlockSpec((tb, 1), lambda i: (i, 0)),
        ],
        out_specs=pl.BlockSpec((tb, 1), lambda i: (i, 0)),
        compiler_params=pltpu.CompilerParams(
            dimension_semantics=("parallel",),
            vmem_limit_bytes=vmem_limit),
    )(output1, output2, target2d)

    # Tiny (B,1) reduction outside the kernel (negligible vs embedding reads).
    return jnp.sum(per_row) * (1.0 / B)


def _reference(output1, output2, target, margin=1.0):
    dot = jnp.sum(output1 * output2, axis=-1)
    s1 = jnp.sum(output1 * output1, axis=-1)
    s2 = jnp.sum(output2 * output2, axis=-1)
    cos = dot / jnp.sqrt(jnp.maximum(s1 * s2, _EPS2))
    return jnp.mean((1.0 - target) * cos ** 2
                    + target * jnp.maximum(margin - cos, 0.0) ** 2)


if __name__ == "__main__":
    key = jax.random.PRNGKey(0)
    k1, k2, k3, k4, k5, k6 = jax.random.split(key, 6)

    # Small shapes consistent with the module: a batch of embedding pairs.
    B, D = 8, 32
    output1 = jax.random.normal(k1, (B, D), dtype=jnp.float32)
    output2 = jax.random.normal(k2, (B, D), dtype=jnp.float32)
    target = jax.random.bernoulli(k3, p=0.5, shape=(B,)).astype(jnp.float32)

    loss = contrastive_loss(output1, output2, target, margin=1.0)
    loss = jax.block_until_ready(loss)
    ref = _reference(output1, output2, target, margin=1.0)
    assert jnp.allclose(loss, ref, atol=1e-5, rtol=1e-5), (loss, ref)

    # Exercise the multi-tile + partial-last-block path (no host padding).
    B2, D2 = 37, 48
    o1b = jax.random.normal(k4, (B2, D2), dtype=jnp.float32)
    o2b = jax.random.normal(k5, (B2, D2), dtype=jnp.float32)
    tb_ = jax.random.bernoulli(k6, p=0.5, shape=(B2,)).astype(jnp.float32)
    loss2 = contrastive_loss(o1b, o2b, tb_, margin=1.0, tile_rows=16)
    loss2 = jax.block_until_ready(loss2)
    ref2 = _reference(o1b, o2b, tb_, margin=1.0)
    assert jnp.allclose(loss2, ref2, atol=1e-5, rtol=1e-5), (loss2, ref2)

    print("KERNEL_OK")
</pallas_src>

<mosaic_0001>
module attributes {stable_mosaic.version = 11 : i64} {
  func.func @_contrastive_loss_kernel(%arg0: i32, %arg1: memref<8x32xf32, #tpu.memory_space<vmem>>, %arg2: memref<8x32xf32, #tpu.memory_space<vmem>>, %arg3: memref<8x1xf32, #tpu.memory_space<vmem>>, %arg4: memref<8x1xf32, #tpu.memory_space<vmem>>) attributes {dimension_semantics = [#tpu.dimension_semantics<parallel>], iteration_bounds = array<i64: 1>, scalar_prefetch = 0 : i64, scratch_operands = 0 : i64, tpu.core_type = #tpu.core_type<tc>, window_params = [{transform_indices = @transform_0, window_bounds = array<i64: 8, 32>}, {transform_indices = @transform_1, window_bounds = array<i64: 8, 32>}, {transform_indices = @transform_2, window_bounds = array<i64: 8, 1>}, {transform_indices = @transform_3, window_bounds = array<i64: 8, 1>}]} {
    %c0 = arith.constant 0 : index
    %c0_0 = arith.constant 0 : index
    %0 = vector.load %arg1[%c0, %c0_0] : memref<8x32xf32, #tpu.memory_space<vmem>>, vector<8x32xf32>
    %c0_1 = arith.constant 0 : index
    %c0_2 = arith.constant 0 : index
    %1 = vector.load %arg2[%c0_1, %c0_2] : memref<8x32xf32, #tpu.memory_space<vmem>>, vector<8x32xf32>
    %c0_3 = arith.constant 0 : index
    %c0_4 = arith.constant 0 : index
    %2 = vector.load %arg3[%c0_3, %c0_4] : memref<8x1xf32, #tpu.memory_space<vmem>>, vector<8x1xf32>
    %3 = arith.mulf %0, %1 : vector<8x32xf32>
    %cst = arith.constant dense<0.000000e+00> : vector<8xf32>
    %4 = vector.multi_reduction <add>, %3, %cst [1] : vector<8x32xf32> to vector<8xf32>
    %5 = vector.shape_cast %4 : vector<8xf32> to vector<8x1xf32>
    %6 = arith.mulf %0, %0 : vector<8x32xf32>
    %cst_5 = arith.constant dense<0.000000e+00> : vector<8xf32>
    %7 = vector.multi_reduction <add>, %6, %cst_5 [1] : vector<8x32xf32> to vector<8xf32>
    %8 = vector.shape_cast %7 : vector<8xf32> to vector<8x1xf32>
    %9 = arith.mulf %1, %1 : vector<8x32xf32>
    %cst_6 = arith.constant dense<0.000000e+00> : vector<8xf32>
    %10 = vector.multi_reduction <add>, %9, %cst_6 [1] : vector<8x32xf32> to vector<8xf32>
    %11 = vector.shape_cast %10 : vector<8xf32> to vector<8x1xf32>
    %12 = arith.mulf %8, %11 : vector<8x1xf32>
    %cst_7 = arith.constant 1.000000e-16 : f32
    %13 = vector.broadcast %cst_7 : f32 to vector<8x1xf32>
    %14 = arith.maximumf %12, %13 : vector<8x1xf32>
    %15 = math.rsqrt %14 : vector<8x1xf32>
    %16 = arith.mulf %5, %15 : vector<8x1xf32>
    %cst_8 = arith.constant 1.000000e+00 : f32
    %17 = vector.broadcast %cst_8 : f32 to vector<8x1xf32>
    %18 = arith.subf %17, %16 : vector<8x1xf32>
    %cst_9 = arith.constant 0.000000e+00 : f32
    %19 = vector.broadcast %cst_9 : f32 to vector<8x1xf32>
    %20 = arith.maximumf %18, %19 : vector<8x1xf32>
    %cst_10 = arith.constant 1.000000e+00 : f32
    %21 = vector.broadcast %cst_10 : f32 to vector<8x1xf32>
    %22 = arith.subf %21, %2 : vector<8x1xf32>
    %23 = arith.mulf %22, %16 : vector<8x1xf32>
    %24 = arith.mulf %23, %16 : vector<8x1xf32>
    %25 = arith.mulf %2, %20 : vector<8x1xf32>
    %26 = arith.mulf %25, %20 : vector<8x1xf32>
    %27 = arith.addf %24, %26 : vector<8x1xf32>
    %c8_i32 = arith.constant 8 : i32
    %28 = arith.muli %arg0, %c8_i32 : i32
    %29 = tpu.iota {dimensions = array<i32: 0>} : vector<8x1xi32>
    %30 = vector.broadcast %28 : i32 to vector<8x1xi32>
    %31 = arith.addi %30, %29 : vector<8x1xi32>
    %c8_i32_11 = arith.constant 8 : i32
    %32 = vector.broadcast %c8_i32_11 : i32 to vector<8x1xi32>
    %33 = arith.cmpi slt, %31, %32 : vector<8x1xi32>
    %cst_12 = arith.constant 0.000000e+00 : f32
    %34 = vector.broadcast %cst_12 : f32 to vector<8x1xf32>
    %35 = arith.select %33, %27, %34 : vector<8x1xi1>, vector<8x1xf32>
    %c0_13 = arith.constant 0 : index
    %c0_14 = arith.constant 0 : index
    %36 = vector.load %arg4[%c0_13, %c0_14] : memref<8x1xf32, #tpu.memory_space<vmem>>, vector<8x1xf32>
    tpu.vector_store %arg4[%c0_13, %c0_14], %35 {strides = array<i32>} : memref<8x1xf32, #tpu.memory_space<vmem>>, vector<8x1xf32>,
    return
  }
  func.func @transform_0(%arg0: i32) -> (i32, i32) {
    %c0_i32 = arith.constant 0 : i32
    %c0_i32_0 = arith.constant 0 : i32
    return %arg0, %c0_i32 : i32, i32
  }
  func.func @transform_1(%arg0: i32) -> (i32, i32) {
    %c0_i32 = arith.constant 0 : i32
    %c0_i32_0 = arith.constant 0 : i32
    return %arg0, %c0_i32 : i32, i32
  }
  func.func @transform_2(%arg0: i32) -> (i32, i32) {
    %c0_i32 = arith.constant 0 : i32
    %c0_i32_0 = arith.constant 0 : i32
    return %arg0, %c0_i32 : i32, i32
  }
  func.func @transform_3(%arg0: i32) -> (i32, i32) {
    %c0_i32 = arith.constant 0 : i32
    %c0_i32_0 = arith.constant 0 : i32
    return %arg0, %c0_i32 : i32, i32
  }
}

</mosaic_0001>

<llo_original>
// kernel: tpu_custom_call.1
$region0: #{tpu_custom_call.1}
  #allocation0 [shape = 'u32[]', space=smem, size = 0x4, offset = 0x4, fixed_abs, tag = 'smem constant byte address 0x4 - core index']
  #allocation1 [shape = 'u32[72,128]{1,0:T(1,128)}', space=vmem, size = 0x9000, scoped, tag = 'internal scratch']
  %s0 = inlined_call_operand.vmem [shape: f32[8,32], index: 0, kind: input, shape index: {}]
  %s1 = inlined_call_operand.hbm [shape: f32[8,32], index: 1, kind: input, shape index: {}]
  %s2 = inlined_call_operand.vmem [shape: f32[8,1], index: 2, kind: input, shape index: {}]
  %s3 = inlined_call_operand.vmem [shape: f32[8,1], index: 3, kind: output, shape index: {}]
  %s4 = sld [smem:[#allocation0]]
  $region26: #{tpu_custom_call.1} parent=0
    _
  %s6 = ssub.s32 1, %s4
  %s7 = scalar_select 0, %s6, %s4
  $region1: #{tpu_custom_call.1} parent=0
    #allocation2 [shape = 'u8[4096]{0}', space=vmem, size = 0x1000, scoped, tag = 'input window, operand 1, single buffered']
    #allocation3 [shape = 's32[1]{0}', space=sflag, size = 0x4, scoped, tag = 'scoped memory for tpu_custom_call.1']
    %8 = vsyncpa [#allocation3], 0
    // Predicated region
    $region2: #{tpu_custom_call.1} parent=1 // pred_check
      _
    $region3: #{tpu_custom_call.1} parent=1 // pred_check_branch
      %10 = sbr.rel (0) target = $region5
    $region4: #{tpu_custom_call.1} parent=1 // pred_region
      _
    $region5: #{tpu_custom_call.1} parent=1 // pred_fallthru
      _
    // Predicated region
    $region6: #{tpu_custom_call.1} parent=1 // pred_check
      _
    $region7: #{tpu_custom_call.1} parent=1 // pred_check_branch
      %12 = sbr.rel (0) target = $region9
    $region8: #{tpu_custom_call.1} parent=1 // pred_region
      %14 = vsyncadd [#allocation3], 0
      %s16 = sshll.u32 %s1, 4
      %s17 = int_to_ptr.hbm [resolvable:$true] %s16
      %s18 = sshll.u32 [#allocation2], 4
      %s19 = int_to_ptr.vmem [resolvable:$true] %s18
      %21 = dma.hbm_to_vmem [thread:$0]  %s17, 128, %s19, [#allocation3]
    $region9: #{tpu_custom_call.1} parent=1 // pred_fallthru
      _
    // Predicated region
    $region10: #{tpu_custom_call.1} parent=1 // pred_check
      _
    $region11: #{tpu_custom_call.1} parent=1 // pred_check_branch
      %23 = sbr.rel (0) target = $region13
    $region12: #{tpu_custom_call.1} parent=1 // pred_region
      _
    $region13: #{tpu_custom_call.1} parent=1 // pred_fallthru
      _
    // Predicated region
    $region14: #{tpu_custom_call.1} parent=1 // pred_check
      _
    $region15: #{tpu_custom_call.1} parent=1 // pred_check_branch
      %25 = sbr.rel (0) target = $region17
    $region16: #{tpu_custom_call.1} parent=1 // pred_region
      %27 = dma.done [#allocation3], 128
    $region17: #{tpu_custom_call.1} parent=1 // pred_fallthru
      _
    %v28 = vld [vmem:[%s0] sm:$0xff]
    %v29 = vld [vmem:[#allocation2] sm:$0xff]
    %v30 = vld [vmem:[%s2] sm:$0xff]
    %v31 = vmul.f32 %v28, %v29
    %vm32 = vcmask 261120
    %v33 = vsel %vm32, %v31, 0.0
    %34 = vadd.xlane.f32.xlu0 %v33
    %v35 = vpop.xlane.xlu0 %34
    %v36 = vmul.f32 %v28, %v28
    %v37 = vsel %vm32, %v36, 0.0
    %38 = vadd.xlane.f32.xlu0 %v37
    %v39 = vpop.xlane.xlu0 %38
    %v40 = vmul.f32 %v29, %v29
    %v41 = vsel %vm32, %v40, 0.0
    %42 = vadd.xlane.f32.xlu0 %v41
    %v43 = vpop.xlane.xlu0 %42
    %v44 = vmul.f32 %v39, %v43
    %v45 = vmax.f32 %v44, 1e-16
    %v46 = vrsqrt.pop %v45
    %v47 = vmul.f32 %v46, %v45
    %v48 = vmul.f32 %v47, %v46
    %v49 = vmul.f32 0.5, %v48
    %v50 = vsub.f32 1.5, %v49
    %v51 = vmul.f32 %v46, %v50
    %vm52 = vweird.f32 %v45
    %vm53 = vweird.f32 %v46
    %vm54 = vmor %vm52, %vm53
    %v55 = vsel %vm54, %v46, %v51
    %v56 = vmul.f32 %v35, %v55
    %v57 = vsub.f32 1.0, %v56
    %v58 = vmax.f32 %v57, 0.0
    %v59 = vsub.f32 1.0, %v30
    %v60 = vmul.f32 %v59, %v56
    %v61 = vmul.f32 %v60, %v56
    %v62 = vmul.f32 %v30, %v58
    %v63 = vmul.f32 %v62, %v58
    %v64 = vadd.f32 %v61, %v63
    %s65 = smul.u32 0, 8
    %v66 = vlaneseq
    %v67 = vshrl.u32 %v66, 7
    %v68 = vstv %s65
    %v69 = vadd.s32 %v68, %v67
    %vm70 = vcmp.lt.s32.totalorder %v69, 8
    %v71 = vsel %vm70, %v64, 0.0
    %vm72 = vcmask 7168
    %73 = vst.msk [vmem:[%s3] sm:$0xff] %vm72, %v71
    // Predicated region
    $region18: #{tpu_custom_call.1} parent=1 // pred_check
      _
    $region19: #{tpu_custom_call.1} parent=1 // pred_check_branch
      %75 = sbr.rel (0) target = $region21
    $region20: #{tpu_custom_call.1} parent=1 // pred_region
      _
    $region21: #{tpu_custom_call.1} parent=1 // pred_fallthru
      _
    // Predicated region
    $region22: #{tpu_custom_call.1} parent=1 // pred_check
      _
    $region23: #{tpu_custom_call.1} parent=1 // pred_check_branch
      %77 = sbr.rel (0) target = $region25
    $region24: #{tpu_custom_call.1} parent=1 // pred_region
      _
    $region25: #{tpu_custom_call.1} parent=1 // pred_fallthru
      _
    %78 = vsyncpa [#allocation3], 1

</llo_original>
